<compile_context>
chip_gen: v5e
topology: v5e:2x2
jax: 0.10.0
libtpu: 0.0.40
codegen_flags: <defaults>
</compile_context>

<pallas_src>
import functools

import jax
import jax.numpy as jnp
import numpy as np
from jax.experimental import pallas as pl
from jax.experimental.pallas import tpu as pltpu

EPS = 1e-5  # nn.LayerNorm default eps


def _conv_relu_ln(x_ext, w_ref, vec_ref, n_rows):
    """Fused Conv1d(k=3, pad=1, stride=1) + ReLU + LayerNorm.

    x_ext:  (n_rows + 2, C_in) f32 value with a 1-row halo on each side of the
            rows being produced.
    w_ref:  (3 * C_in, C_out) VMEM ref — the 3 taps folded into the matmul K.
    vec_ref:(3, C_out) f32 VMEM ref packing [bias; ln_gamma; ln_beta].
    Returns (n_rows, C_out) float32.
    """
    # im2col over the 3 taps -> a single wide-K MXU matmul instead of three
    # narrow-K ones (and no zero-padded shifted copies of the tile).
    xs = jnp.concatenate(
        [x_ext[0:n_rows], x_ext[1:n_rows + 1], x_ext[2:n_rows + 2]],
        axis=-1).astype(w_ref.dtype)
    y = jnp.dot(xs, w_ref[...], preferred_element_type=jnp.float32)
    vec = vec_ref[...]                                   # f32
    y = jnp.maximum(y + vec[0:1], 0.0)                   # bias + ReLU
    mean = jnp.mean(y, axis=-1, keepdims=True)           # LayerNorm (f32)
    var = jnp.mean((y - mean) ** 2, axis=-1, keepdims=True)
    y = (y - mean) * jax.lax.rsqrt(var + EPS)
    return y * vec[1:2] + vec[2:3]
    # TODO(synk): nn.Dropout(0.5) is identity at inference; training-mode RNG
    # dropout (pltpu.prng_*) is intentionally not implemented.


def phoneme_kernel(x_ref, halo_ref, w1_ref, vec1_ref, w2_ref, vec2_ref,
                   wl_ref, bl_ref, o_ref, *, t_tile, seq_len):
    # x_ref:    (1, t_tile, C_in) tile of the (padded) input.
    # halo_ref: (1, 1, 4, C_in)  rows [t0-2, t0-1, t0+Tt, t0+Tt+1] (zeros at
    #           the global boundaries), i.e. the 2-row halo on each side.
    x_tile = x_ref[0].astype(jnp.float32)                # (Tt, Cin)
    halo = halo_ref[0, 0].astype(jnp.float32)            # (4, Cin)
    x_ext = jnp.concatenate([halo[0:2], x_tile, halo[2:4]], axis=0)  # (Tt+4, Cin)

    # Layer 1 on Tt+2 rows (1-row halo kept for the second conv).
    h1 = _conv_relu_ln(x_ext, w1_ref, vec1_ref, t_tile + 2)

    # Zero the rows that lie outside the real sequence so they behave exactly
    # like conv2's zero padding (also handles T not divisible by the tile).
    g = (pl.program_id(1) * t_tile - 1
         + jax.lax.broadcasted_iota(jnp.int32, (t_tile + 2, 1), 0))
    h1 = jnp.where((g >= 0) & (g < seq_len), h1, 0.0)

    # Layer 2 produces exactly the Tt output rows of this tile.
    h2 = _conv_relu_ln(h1, w2_ref, vec2_ref, t_tile)

    out = jnp.dot(h2.astype(wl_ref.dtype), wl_ref[...],
                  preferred_element_type=jnp.float32) + bl_ref[...]
    o_ref[0] = out.astype(o_ref.dtype)                   # (Tt, lat_pad)


def phoneme_level_predictor(x, p, *, t_tile=128, use_bf16=False):
    """x: (B, T, in_dim) -> (B, T, latent_hs)."""
    B, T, cin = x.shape
    hidden = p["w1"].shape[2]
    latent_hs = p["w_lin"].shape[1]

    # --- static tiling decisions (keep per-step footprint small; re-derive
    #     per generation — t_tile=128 is comfortably under v7x's scoped VMEM).
    tt = min(t_tile, T)
    tt = -(-tt // 8) * 8                        # sublane-aligned T tile
    t_pad = -(-T // tt) * tt
    nt = t_pad // tt
    lat_pad = -(-latent_hs // 128) * 128        # lane-dense output tile

    # --- wrapper-side layout plumbing (cheap XLA ops) -----------------------
    x_pad = x if t_pad == T else jnp.pad(x, ((0, 0), (0, t_pad - T), (0, 0)))
    # 2-row halos per tile (receptive field of two stacked k=3 convs).
    x_pp = jnp.pad(x_pad, ((0, 0), (2, 2), (0, 0)))              # (B, T_pad+4, C)
    left = x_pp[:, :t_pad, :].reshape(B, nt, tt, cin)[:, :, :2, :]
    right = x_pp[:, 4:, :].reshape(B, nt, tt, cin)[:, :, tt - 2:, :]
    halo = jnp.concatenate([left, right], axis=2)                # (B, nt, 4, C)

    w1f = p["w1"].reshape(3 * cin, hidden)        # taps folded into K
    w2f = p["w2"].reshape(3 * hidden, hidden)
    vec1 = jnp.concatenate([p["b1"], p["g1"], p["be1"]], axis=0)  # (3, hidden)
    vec2 = jnp.concatenate([p["b2"], p["g2"], p["be2"]], axis=0)
    wl = jnp.pad(p["w_lin"], ((0, 0), (0, lat_pad - latent_hs)))
    bl = jnp.pad(p["b_lin"], ((0, 0), (0, lat_pad - latent_hs)))

    # bf16 MXU operands (v6e/v7x); LayerNorm and bias/gamma/beta stay f32.
    cdt = jnp.bfloat16 if use_bf16 else x.dtype
    x_pad, halo = x_pad.astype(cdt), halo.astype(cdt)
    w1f, w2f, wl = w1f.astype(cdt), w2f.astype(cdt), wl.astype(cdt)
    vec1 = vec1.astype(jnp.float32)
    vec2 = vec2.astype(jnp.float32)
    bl = bl.astype(jnp.float32)

    def const(arr):
        shp = arr.shape
        return pl.BlockSpec(shp, lambda b, t: (0,) * len(shp))

    flops = 2 * B * t_pad * (3 * cin * hidden + 3 * hidden * hidden
                             + hidden * lat_pad)
    bytes_accessed = (x_pad.size * x_pad.dtype.itemsize
                      + halo.size * halo.dtype.itemsize
                      + w1f.size * w1f.dtype.itemsize
                      + w2f.size * w2f.dtype.itemsize
                      + wl.size * wl.dtype.itemsize
                      + vec1.size * 8 + bl.size * 4
                      + B * t_pad * lat_pad * x.dtype.itemsize)

    out = pl.pallas_call(
        functools.partial(phoneme_kernel, t_tile=tt, seq_len=T),
        out_shape=jax.ShapeDtypeStruct((B, t_pad, lat_pad), x.dtype),
        grid=(B, nt),
        in_specs=[
            pl.BlockSpec((1, tt, cin), lambda b, t: (b, t, 0)),
            pl.BlockSpec((1, 1, 4, cin), lambda b, t: (b, t, 0, 0)),
            const(w1f), const(vec1), const(w2f), const(vec2),
            const(wl), const(bl),
        ],
        out_specs=pl.BlockSpec((1, tt, lat_pad), lambda b, t: (b, t, 0)),
        compiler_params=pltpu.CompilerParams(
            dimension_semantics=("parallel", "parallel")),
        cost_estimate=pl.CostEstimate(
            flops=flops, transcendentals=2 * B * t_pad,
            bytes_accessed=bytes_accessed),
    )(x_pad, halo, w1f, vec1, w2f, vec2, wl, bl)

    return out[:, :T, :latent_hs]


def reference(x, p):
    """Pure-JAX reference of the same forward pass (for validation)."""
    def layer(h, w, b, g, be):
        zero = jnp.zeros((h.shape[0], 1, h.shape[2]), h.dtype)
        hp = jnp.concatenate([zero, h[:, :-1]], axis=1)
        hn = jnp.concatenate([h[:, 1:], zero], axis=1)
        y = (jnp.einsum("btc,cd->btd", hp, w[0])
             + jnp.einsum("btc,cd->btd", h, w[1])
             + jnp.einsum("btc,cd->btd", hn, w[2]) + b)
        y = jnp.maximum(y, 0.0)
        m = y.mean(-1, keepdims=True)
        v = ((y - m) ** 2).mean(-1, keepdims=True)
        return (y - m) * jax.lax.rsqrt(v + EPS) * g + be
    h = layer(x, p["w1"], p["b1"], p["g1"], p["be1"])
    h = layer(h, p["w2"], p["b2"], p["g2"], p["be2"])
    return h @ p["w_lin"] + p["b_lin"]


def make_params(key, in_dim, hidden, latent_hs, kernel_size=3):
    ks = jax.random.split(key, 6)
    s1 = 1.0 / np.sqrt(in_dim * kernel_size)
    s2 = 1.0 / np.sqrt(hidden * kernel_size)
    sl = 1.0 / np.sqrt(hidden)
    return {
        # conv weights stored as (K, C_in, C_out) == torch (C_out, C_in, K).T
        "w1": jax.random.uniform(ks[0], (kernel_size, in_dim, hidden),
                                 jnp.float32, -s1, s1),
        "b1": jax.random.uniform(ks[1], (1, hidden), jnp.float32, -s1, s1),
        "g1": jnp.ones((1, hidden), jnp.float32),
        "be1": jnp.zeros((1, hidden), jnp.float32),
        "w2": jax.random.uniform(ks[2], (kernel_size, hidden, hidden),
                                 jnp.float32, -s2, s2),
        "b2": jax.random.uniform(ks[3], (1, hidden), jnp.float32, -s2, s2),
        "g2": jnp.ones((1, hidden), jnp.float32),
        "be2": jnp.zeros((1, hidden), jnp.float32),
        "w_lin": jax.random.uniform(ks[4], (hidden, latent_hs),
                                    jnp.float32, -sl, sl),
        "b_lin": jax.random.uniform(ks[5], (1, latent_hs),
                                    jnp.float32, -sl, sl),
    }


if __name__ == "__main__":
    B, T = 2, 32
    in_dim, hidden, latent_hs = 32, 32, 4

    key = jax.random.PRNGKey(0)
    kx, kp = jax.random.split(key)
    x = jax.random.normal(kx, (B, T, in_dim), jnp.float32)
    params = make_params(kp, in_dim, hidden, latent_hs)

    ref = jax.block_until_ready(reference(x, params))

    # f32 path, T tiled into 2 tiles of 16 -> exercises halo + mask logic.
    out = jax.block_until_ready(
        phoneme_level_predictor(x, params, t_tile=16))
    np.testing.assert_allclose(np.asarray(out), np.asarray(ref),
                               rtol=1e-4, atol=1e-4)

    # Ragged T (not a multiple of the tile) goes through padding + masking.
    out_r = jax.block_until_ready(
        phoneme_level_predictor(x[:, :27], params, t_tile=16))
    ref_r = jax.block_until_ready(reference(x[:, :27], params))
    np.testing.assert_allclose(np.asarray(out_r), np.asarray(ref_r),
                               rtol=1e-4, atol=1e-4)

    # bf16 MXU-operand path (v6e/v7x); LayerNorm stays f32, so only matmul
    # rounding differs from the f32 reference.
    out_bf16 = jax.block_until_ready(
        phoneme_level_predictor(x, params, t_tile=16, use_bf16=True))
    np.testing.assert_allclose(np.asarray(out_bf16), np.asarray(ref),
                               rtol=1e-1, atol=1e-1)

    print("KERNEL_OK")
</pallas_src>

<mosaic_0001>
module attributes {stable_mosaic.version = 11 : i64} {
  func.func @phoneme_kernel(%arg0: i32, %arg1: i32, %arg2: memref<1x16x32xf32, #tpu.memory_space<vmem>>, %arg3: memref<1x1x4x32xf32, #tpu.memory_space<vmem>>, %arg4: memref<96x32xf32, #tpu.memory_space<vmem>>, %arg5: memref<3x32xf32, #tpu.memory_space<vmem>>, %arg6: memref<96x32xf32, #tpu.memory_space<vmem>>, %arg7: memref<3x32xf32, #tpu.memory_space<vmem>>, %arg8: memref<32x128xf32, #tpu.memory_space<vmem>>, %arg9: memref<1x128xf32, #tpu.memory_space<vmem>>, %arg10: memref<1x16x128xf32, #tpu.memory_space<vmem>>) attributes {dimension_semantics = [#tpu.dimension_semantics<parallel>, #tpu.dimension_semantics<parallel>], iteration_bounds = array<i64: 2, 2>, scalar_prefetch = 0 : i64, scratch_operands = 0 : i64, tpu.core_type = #tpu.core_type<tc>, window_params = [{transform_indices = @transform_0, window_bounds = array<i64: 1, 16, 32>}, {transform_indices = @transform_1, window_bounds = array<i64: 1, 1, 4, 32>}, {pipeline_mode = #tpu.pipeline_mode<synchronous>, transform_indices = @transform_2, window_bounds = array<i64: 96, 32>}, {pipeline_mode = #tpu.pipeline_mode<synchronous>, transform_indices = @transform_3, window_bounds = array<i64: 3, 32>}, {pipeline_mode = #tpu.pipeline_mode<synchronous>, transform_indices = @transform_4, window_bounds = array<i64: 96, 32>}, {pipeline_mode = #tpu.pipeline_mode<synchronous>, transform_indices = @transform_5, window_bounds = array<i64: 3, 32>}, {pipeline_mode = #tpu.pipeline_mode<synchronous>, transform_indices = @transform_6, window_bounds = array<i64: 32, 128>}, {pipeline_mode = #tpu.pipeline_mode<synchronous>, transform_indices = @transform_7, window_bounds = array<i64: 1, 128>}, {transform_indices = @transform_8, window_bounds = array<i64: 1, 16, 128>}]} {
    %c0 = arith.constant 0 : index
    %c0_0 = arith.constant 0 : index
    %c0_1 = arith.constant 0 : index
    %0 = vector.load %arg2[%c0, %c0_0, %c0_1] : memref<1x16x32xf32, #tpu.memory_space<vmem>>, vector<1x16x32xf32>
    %1 = vector.shape_cast %0 : vector<1x16x32xf32> to vector<16x32xf32>
    %c0_2 = arith.constant 0 : index
    %c0_3 = arith.constant 0 : index
    %c0_4 = arith.constant 0 : index
    %c0_5 = arith.constant 0 : index
    %2 = vector.load %arg3[%c0_2, %c0_3, %c0_4, %c0_5] : memref<1x1x4x32xf32, #tpu.memory_space<vmem>>, vector<1x1x4x32xf32>
    %3 = vector.shape_cast %2 : vector<1x1x4x32xf32> to vector<4x32xf32>
    %4 = vector.extract_strided_slice %3 {offsets = [0, 0], sizes = [2, 32], strides = [1, 1]} : vector<4x32xf32> to vector<2x32xf32>
    %5 = vector.extract_strided_slice %3 {offsets = [2, 0], sizes = [2, 32], strides = [1, 1]} : vector<4x32xf32> to vector<2x32xf32>
    %6 = tpu.concatenate %4, %1, %5 in 0 : vector<2x32xf32>, vector<16x32xf32>, vector<2x32xf32> -> vector<20x32xf32>
    %7 = vector.extract_strided_slice %6 {offsets = [0, 0], sizes = [18, 32], strides = [1, 1]} : vector<20x32xf32> to vector<18x32xf32>
    %8 = vector.extract_strided_slice %6 {offsets = [1, 0], sizes = [18, 32], strides = [1, 1]} : vector<20x32xf32> to vector<18x32xf32>
    %9 = vector.extract_strided_slice %6 {offsets = [2, 0], sizes = [18, 32], strides = [1, 1]} : vector<20x32xf32> to vector<18x32xf32>
    %10 = tpu.concatenate %7, %8, %9 in 1 : vector<18x32xf32>, vector<18x32xf32>, vector<18x32xf32> -> vector<18x96xf32>
    %c0_6 = arith.constant 0 : index
    %c0_7 = arith.constant 0 : index
    %11 = vector.load %arg4[%c0_6, %c0_7] : memref<96x32xf32, #tpu.memory_space<vmem>>, vector<96x32xf32>
    %cst = arith.constant dense<0.000000e+00> : vector<18x32xf32>
    %12 = tpu.matmul %10, %11, %cst {dimension_numbers = #tpu.dot_dimension_numbers<[1], [0], [0], [1], [0, 0, 1, 1], [], []>} : vector<18x96xf32>, vector<96x32xf32>, vector<18x32xf32> -> vector<18x32xf32>
    %c0_8 = arith.constant 0 : index
    %c0_9 = arith.constant 0 : index
    %13 = vector.load %arg5[%c0_8, %c0_9] : memref<3x32xf32, #tpu.memory_space<vmem>>, vector<3x32xf32>
    %14 = vector.extract_strided_slice %13 {offsets = [0, 0], sizes = [1, 32], strides = [1, 1]} : vector<3x32xf32> to vector<1x32xf32>
    %15 = vector.broadcast %14 : vector<1x32xf32> to vector<18x32xf32>
    %16 = arith.addf %12, %15 : vector<18x32xf32>
    %cst_10 = arith.constant 0.000000e+00 : f32
    %17 = vector.broadcast %cst_10 : f32 to vector<18x32xf32>
    %18 = arith.maximumf %16, %17 : vector<18x32xf32>
    %cst_11 = arith.constant dense<0.000000e+00> : vector<18xf32>
    %19 = vector.multi_reduction <add>, %18, %cst_11 [1] : vector<18x32xf32> to vector<18xf32>
    %20 = vector.shape_cast %19 : vector<18xf32> to vector<18x1xf32>
    %cst_12 = arith.constant 3.200000e+01 : f32
    %21 = vector.broadcast %cst_12 : f32 to vector<18x1xf32>
    %22 = arith.divf %20, %21 : vector<18x1xf32>
    %23 = vector.broadcast %22 : vector<18x1xf32> to vector<18x32xf32>
    %24 = arith.subf %18, %23 : vector<18x32xf32>
    %25 = arith.mulf %24, %24 : vector<18x32xf32>
    %cst_13 = arith.constant dense<0.000000e+00> : vector<18xf32>
    %26 = vector.multi_reduction <add>, %25, %cst_13 [1] : vector<18x32xf32> to vector<18xf32>
    %27 = vector.shape_cast %26 : vector<18xf32> to vector<18x1xf32>
    %cst_14 = arith.constant 3.200000e+01 : f32
    %28 = vector.broadcast %cst_14 : f32 to vector<18x1xf32>
    %29 = arith.divf %27, %28 : vector<18x1xf32>
    %30 = vector.broadcast %22 : vector<18x1xf32> to vector<18x32xf32>
    %31 = arith.subf %18, %30 : vector<18x32xf32>
    %cst_15 = arith.constant 9.99999974E-6 : f32
    %32 = vector.broadcast %cst_15 : f32 to vector<18x1xf32>
    %33 = arith.addf %29, %32 : vector<18x1xf32>
    %34 = math.rsqrt %33 : vector<18x1xf32>
    %35 = vector.broadcast %34 : vector<18x1xf32> to vector<18x32xf32>
    %36 = arith.mulf %31, %35 : vector<18x32xf32>
    %37 = vector.extract_strided_slice %13 {offsets = [1, 0], sizes = [1, 32], strides = [1, 1]} : vector<3x32xf32> to vector<1x32xf32>
    %38 = vector.broadcast %37 : vector<1x32xf32> to vector<18x32xf32>
    %39 = arith.mulf %36, %38 : vector<18x32xf32>
    %40 = vector.extract_strided_slice %13 {offsets = [2, 0], sizes = [1, 32], strides = [1, 1]} : vector<3x32xf32> to vector<1x32xf32>
    %41 = vector.broadcast %40 : vector<1x32xf32> to vector<18x32xf32>
    %42 = arith.addf %39, %41 : vector<18x32xf32>
    %c16_i32 = arith.constant 16 : i32
    %43 = arith.muli %arg1, %c16_i32 : i32
    %c1_i32 = arith.constant 1 : i32
    %44 = arith.subi %43, %c1_i32 : i32
    %45 = tpu.iota {dimensions = array<i32: 0>} : vector<18x1xi32>
    %46 = vector.broadcast %44 : i32 to vector<18x1xi32>
    %47 = arith.addi %46, %45 : vector<18x1xi32>
    %c0_i32 = arith.constant 0 : i32
    %48 = vector.broadcast %c0_i32 : i32 to vector<18x1xi32>
    %49 = arith.cmpi sge, %47, %48 : vector<18x1xi32>
    %c32_i32 = arith.constant 32 : i32
    %50 = vector.broadcast %c32_i32 : i32 to vector<18x1xi32>
    %51 = arith.cmpi slt, %47, %50 : vector<18x1xi32>
    %52 = arith.andi %49, %51 : vector<18x1xi1>
    %cst_16 = arith.constant 0.000000e+00 : f32
    %53 = vector.shape_cast %52 : vector<18x1xi1> to vector<18x1xi1>
    %54 = vector.broadcast %53 : vector<18x1xi1> to vector<18x32xi1>
    %55 = vector.broadcast %cst_16 : f32 to vector<18x32xf32>
    %56 = arith.select %54, %42, %55 : vector<18x32xi1>, vector<18x32xf32>
    %57 = vector.extract_strided_slice %56 {offsets = [0, 0], sizes = [16, 32], strides = [1, 1]} : vector<18x32xf32> to vector<16x32xf32>
    %58 = vector.extract_strided_slice %56 {offsets = [1, 0], sizes = [16, 32], strides = [1, 1]} : vector<18x32xf32> to vector<16x32xf32>
    %59 = vector.extract_strided_slice %56 {offsets = [2, 0], sizes = [16, 32], strides = [1, 1]} : vector<18x32xf32> to vector<16x32xf32>
    %60 = tpu.concatenate %57, %58, %59 in 1 : vector<16x32xf32>, vector<16x32xf32>, vector<16x32xf32> -> vector<16x96xf32>
    %c0_17 = arith.constant 0 : index
    %c0_18 = arith.constant 0 : index
    %61 = vector.load %arg6[%c0_17, %c0_18] : memref<96x32xf32, #tpu.memory_space<vmem>>, vector<96x32xf32>
    %cst_19 = arith.constant dense<0.000000e+00> : vector<16x32xf32>
    %62 = tpu.matmul %60, %61, %cst_19 {dimension_numbers = #tpu.dot_dimension_numbers<[1], [0], [0], [1], [0, 0, 1, 1], [], []>} : vector<16x96xf32>, vector<96x32xf32>, vector<16x32xf32> -> vector<16x32xf32>
    %c0_20 = arith.constant 0 : index
    %c0_21 = arith.constant 0 : index
    %63 = vector.load %arg7[%c0_20, %c0_21] : memref<3x32xf32, #tpu.memory_space<vmem>>, vector<3x32xf32>
    %64 = vector.extract_strided_slice %63 {offsets = [0, 0], sizes = [1, 32], strides = [1, 1]} : vector<3x32xf32> to vector<1x32xf32>
    %65 = vector.broadcast %64 : vector<1x32xf32> to vector<16x32xf32>
    %66 = arith.addf %62, %65 : vector<16x32xf32>
    %cst_22 = arith.constant 0.000000e+00 : f32
    %67 = vector.broadcast %cst_22 : f32 to vector<16x32xf32>
    %68 = arith.maximumf %66, %67 : vector<16x32xf32>
    %cst_23 = arith.constant dense<0.000000e+00> : vector<16xf32>
    %69 = vector.multi_reduction <add>, %68, %cst_23 [1] : vector<16x32xf32> to vector<16xf32>
    %70 = vector.shape_cast %69 : vector<16xf32> to vector<16x1xf32>
    %cst_24 = arith.constant 3.200000e+01 : f32
    %71 = vector.broadcast %cst_24 : f32 to vector<16x1xf32>
    %72 = arith.divf %70, %71 : vector<16x1xf32>
    %73 = vector.broadcast %72 : vector<16x1xf32> to vector<16x32xf32>
    %74 = arith.subf %68, %73 : vector<16x32xf32>
    %75 = arith.mulf %74, %74 : vector<16x32xf32>
    %cst_25 = arith.constant dense<0.000000e+00> : vector<16xf32>
    %76 = vector.multi_reduction <add>, %75, %cst_25 [1] : vector<16x32xf32> to vector<16xf32>
    %77 = vector.shape_cast %76 : vector<16xf32> to vector<16x1xf32>
    %cst_26 = arith.constant 3.200000e+01 : f32
    %78 = vector.broadcast %cst_26 : f32 to vector<16x1xf32>
    %79 = arith.divf %77, %78 : vector<16x1xf32>
    %80 = vector.broadcast %72 : vector<16x1xf32> to vector<16x32xf32>
    %81 = arith.subf %68, %80 : vector<16x32xf32>
    %cst_27 = arith.constant 9.99999974E-6 : f32
    %82 = vector.broadcast %cst_27 : f32 to vector<16x1xf32>
    %83 = arith.addf %79, %82 : vector<16x1xf32>
    %84 = math.rsqrt %83 : vector<16x1xf32>
    %85 = vector.broadcast %84 : vector<16x1xf32> to vector<16x32xf32>
    %86 = arith.mulf %81, %85 : vector<16x32xf32>
    %87 = vector.extract_strided_slice %63 {offsets = [1, 0], sizes = [1, 32], strides = [1, 1]} : vector<3x32xf32> to vector<1x32xf32>
    %88 = vector.broadcast %87 : vector<1x32xf32> to vector<16x32xf32>
    %89 = arith.mulf %86, %88 : vector<16x32xf32>
    %90 = vector.extract_strided_slice %63 {offsets = [2, 0], sizes = [1, 32], strides = [1, 1]} : vector<3x32xf32> to vector<1x32xf32>
    %91 = vector.broadcast %90 : vector<1x32xf32> to vector<16x32xf32>
    %92 = arith.addf %89, %91 : vector<16x32xf32>
    %c0_28 = arith.constant 0 : index
    %c0_29 = arith.constant 0 : index
    %93 = vector.load %arg8[%c0_28, %c0_29] : memref<32x128xf32, #tpu.memory_space<vmem>>, vector<32x128xf32>
    %cst_30 = arith.constant dense<0.000000e+00> : vector<16x128xf32>
    %94 = tpu.matmul %92, %93, %cst_30 {dimension_numbers = #tpu.dot_dimension_numbers<[1], [0], [0], [1], [0, 0, 1, 1], [], []>} : vector<16x32xf32>, vector<32x128xf32>, vector<16x128xf32> -> vector<16x128xf32>
    %c0_31 = arith.constant 0 : index
    %c0_32 = arith.constant 0 : index
    %95 = vector.load %arg9[%c0_31, %c0_32] : memref<1x128xf32, #tpu.memory_space<vmem>>, vector<1x128xf32>
    %96 = vector.broadcast %95 : vector<1x128xf32> to vector<16x128xf32>
    %97 = arith.addf %94, %96 : vector<16x128xf32>
    %c0_33 = arith.constant 0 : index
    %c0_34 = arith.constant 0 : index
    %c0_35 = arith.constant 0 : index
    %98 = vector.load %arg10[%c0_33, %c0_34, %c0_35] : memref<1x16x128xf32, #tpu.memory_space<vmem>>, vector<1x16x128xf32>
    %99 = vector.shape_cast %98 : vector<1x16x128xf32> to vector<16x128xf32>
    %100 = vector.shape_cast %97 : vector<16x128xf32> to vector<1x16x128xf32>
    tpu.vector_store %arg10[%c0_33, %c0_34, %c0_35], %100 {strides = array<i32>} : memref<1x16x128xf32, #tpu.memory_space<vmem>>, vector<1x16x128xf32>,
    return
  }
  func.func @transform_0(%arg0: i32, %arg1: i32) -> (i32, i32, i32) {
    %c0_i32 = arith.constant 0 : i32
    %c0_i32_0 = arith.constant 0 : i32
    return %arg0, %arg1, %c0_i32 : i32, i32, i32
  }
  func.func @transform_1(%arg0: i32, %arg1: i32) -> (i32, i32, i32, i32) {
    %c0_i32 = arith.constant 0 : i32
    %c0_i32_0 = arith.constant 0 : i32
    %c0_i32_1 = arith.constant 0 : i32
    return %arg0, %arg1, %c0_i32, %c0_i32_0 : i32, i32, i32, i32
  }
  func.func @transform_2(%arg0: i32, %arg1: i32) -> (i32, i32) {
    %c0_i32 = arith.constant 0 : i32
    %c0_i32_0 = arith.constant 0 : i32
    %c0_i32_1 = arith.constant 0 : i32
    return %c0_i32, %c0_i32_0 : i32, i32
  }
  func.func @transform_3(%arg0: i32, %arg1: i32) -> (i32, i32) {
    %c0_i32 = arith.constant 0 : i32
    %c0_i32_0 = arith.constant 0 : i32
    %c0_i32_1 = arith.constant 0 : i32
    return %c0_i32, %c0_i32_0 : i32, i32
  }
  func.func @transform_4(%arg0: i32, %arg1: i32) -> (i32, i32) {
    %c0_i32 = arith.constant 0 : i32
    %c0_i32_0 = arith.constant 0 : i32
    %c0_i32_1 = arith.constant 0 : i32
    return %c0_i32, %c0_i32_0 : i32, i32
  }
  func.func @transform_5(%arg0: i32, %arg1: i32) -> (i32, i32) {
    %c0_i32 = arith.constant 0 : i32
    %c0_i32_0 = arith.constant 0 : i32
    %c0_i32_1 = arith.constant 0 : i32
    return %c0_i32, %c0_i32_0 : i32, i32
  }
  func.func @transform_6(%arg0: i32, %arg1: i32) -> (i32, i32) {
    %c0_i32 = arith.constant 0 : i32
    %c0_i32_0 = arith.constant 0 : i32
    %c0_i32_1 = arith.constant 0 : i32
    return %c0_i32, %c0_i32_0 : i32, i32
  }
  func.func @transform_7(%arg0: i32, %arg1: i32) -> (i32, i32) {
    %c0_i32 = arith.constant 0 : i32
    %c0_i32_0 = arith.constant 0 : i32
    %c0_i32_1 = arith.constant 0 : i32
    return %c0_i32, %c0_i32_0 : i32, i32
  }
  func.func @transform_8(%arg0: i32, %arg1: i32) -> (i32, i32, i32) {
    %c0_i32 = arith.constant 0 : i32
    %c0_i32_0 = arith.constant 0 : i32
    return %arg0, %arg1, %c0_i32 : i32, i32, i32
  }
}

</mosaic_0001>

<llo_original>
// kernel: tpu_custom_call.1
$region0: #{tpu_custom_call.1}
  #allocation0 [shape = 'u32[]', space=smem, size = 0x4, offset = 0x4, fixed_abs, tag = 'smem constant byte address 0x4 - core index']
  #allocation1 [shape = 'u32[72,128]{1,0:T(1,128)}', space=vmem, size = 0x9000, scoped, tag = 'internal scratch']
  %s0 = inlined_call_operand.vmem [shape: f32[2,32,32], index: 0, kind: input, shape index: {}]
  %s1 = inlined_call_operand.vmem [shape: f32[2,2,4,32], index: 1, kind: input, shape index: {}]
  %s2 = inlined_call_operand.vmem [shape: f32[96,32], index: 2, kind: input, shape index: {}]
  %s3 = inlined_call_operand.vmem [shape: f32[3,32], index: 3, kind: input, shape index: {}]
  %s4 = inlined_call_operand.vmem [shape: f32[96,32], index: 4, kind: input, shape index: {}]
  %s5 = inlined_call_operand.vmem [shape: f32[3,32], index: 5, kind: input, shape index: {}]
  %s6 = inlined_call_operand.vmem [shape: f32[32,128], index: 6, kind: input, shape index: {}]
  %s7 = inlined_call_operand.vmem [shape: f32[1,128], index: 7, kind: input, shape index: {}]
  %s8 = inlined_call_operand.hbm [shape: f32[2,32,128], index: 8, kind: output, shape index: {}]
  %s9 = sld [smem:[#allocation0]]
  $region65: #{tpu_custom_call.1} parent=0
    _
  %s11 = ssub.s32 1, %s9
  %s12 = scalar_select 0, %s11, %s9
  $region1: #{tpu_custom_call.1} parent=0
    #allocation2 [shape = 'u8[16384]{0}', space=vmem, size = 0x4000, scoped, tag = 'output window, operand 0']
    #allocation3 [shape = 's32[2]{0}', space=sflag, size = 0x8, scoped, tag = 'scoped memory for tpu_custom_call.1']
    %13 = vsyncpa [#allocation3], 0
    %s14 = scalar_lea.sflag [#allocation3], 1
    %15 = vsyncpa %s14, 0
    loop: start=0, step=1, limit=6
    $region2: #{tpu_custom_call.1} parent=1 // loop_pre_header
      _
    $region3: #{tpu_custom_call.1} parent=1 // loop_header
      %s17 = sphi 0, %s21
      %p18 = scmp.ge.s32.totalorder %s17, 6
      %s24 = sphi 0, %s36
      %s25 = sphi 0, %s32
      %s26 = sphi 0, %s24
      %s27 = sphi 0, %s25
      %s28 = sphi 0, %s26
      %s29 = sphi 0, %s27
      %s41 = sphi 0, %s43
      %s44 = sphi 0, %s41
      %s45 = sphi 0, %s44
      %s61 = sphi 0, %s45
      %s69 = sphi 0, %s71
      %s72 = sphi 0, %s69
      %s73 = sphi 0, %s72
      %s89 = sphi 0, %s73
      %s93 = sphi 0, %s93
      %s95 = sphi 0, %s93
      %s96 = sphi 0, %s95
      %s110 = sphi 0, %s96
      %s114 = sphi 0, %s114
      %s116 = sphi 0, %s114
      %s117 = sphi 0, %s116
      %s131 = sphi 0, %s117
      %s135 = sphi 0, %s135
      %s137 = sphi 0, %s135
      %s138 = sphi 0, %s137
      %s152 = sphi 0, %s138
      %s156 = sphi 0, %s156
      %s158 = sphi 0, %s156
      %s159 = sphi 0, %s158
      %s173 = sphi 0, %s159
      %s177 = sphi 0, %s177
      %s179 = sphi 0, %s177
      %s180 = sphi 0, %s179
      %s194 = sphi 0, %s180
      %s198 = sphi 0, %s198
      %s200 = sphi 0, %s198
      %s201 = sphi 0, %s200
      %s215 = sphi 0, %s201
      %s223 = sphi 0, %s225
      %s226 = sphi 0, %s223
      %s227 = sphi 0, %s226
      %s243 = sphi 0, %s227
    $region4: #{tpu_custom_call.1} parent=1 // loop_header_branch
      %20 = sbr.rel (%p18) target = $region8
    $region5: #{tpu_custom_call.1} parent=1 // loop_body
      %s22 = ssub.s32 %s17, 1
      %s23 = ssub.s32 %s17, 2
      %s30 = sadd.s32 1, %s25
      %p31 = scmp.ge.s32.totalorder %s30, 2
      %s32 = scalar_select %p31, 0, %s30
      %s33 = sadd.s32 1, %s24
      %s34 = scalar_select %p31, %s33, %s24
      %p35 = scmp.ge.s32.totalorder %s34, 2
      %s36 = scalar_select %p35, 0, %s34
      %s37 = ssub.s32 %s24, %s36
      %s38 = ssub.s32 %s25, %s32
      %s39 = sor.u32 %s37, %s38
      %p40 = scmp.eq.s32.totalorder %s39, 0
      %s42 = sadd.s32 %s41, 1
      %s43 = scalar_select %p40, %s41, %s42
      %p46 = pneg %p40
      %p47 = scmp.eq.s32.totalorder %s17, 3
      %p48 = por %p46, %p47
      %p49 = scmp.ne.s32.totalorder %s41, %s44
      %p50 = scmp.eq.s32.totalorder %s17, 0
      %p51 = por %p49, %p50
      %p52 = scmp.ne.s32.totalorder %s41, %s44
      %p53 = scmp.eq.s32.totalorder %s22, 3
      %p54 = por %p52, %p53
      %p55 = scmp.ne.s32.totalorder %s44, %s45
      %p56 = scmp.eq.s32.totalorder %s22, 0
      %p57 = por %p55, %p56
      %p58 = scmp.ne.s32.totalorder %s44, %s45
      %p59 = scmp.eq.s32.totalorder %s23, 3
      %p60 = por %p58, %p59
      %p62 = scmp.ne.s32.totalorder %s45, %s61
      %p63 = scmp.eq.s32.totalorder %s23, 0
      %p64 = por %p62, %p63
      %s65 = ssub.s32 %s24, %s36
      %s66 = ssub.s32 %s25, %s32
      %s67 = sor.u32 %s65, %s66
      %p68 = scmp.eq.s32.totalorder %s67, 0
      %s70 = sadd.s32 %s69, 1
      %s71 = scalar_select %p68, %s69, %s70
      %p74 = pneg %p68
      %p75 = scmp.eq.s32.totalorder %s17, 3
      %p76 = por %p74, %p75
      %p77 = scmp.ne.s32.totalorder %s69, %s72
      %p78 = scmp.eq.s32.totalorder %s17, 0
      %p79 = por %p77, %p78
      %p80 = scmp.ne.s32.totalorder %s69, %s72
      %p81 = scmp.eq.s32.totalorder %s22, 3
      %p82 = por %p80, %p81
      %p83 = scmp.ne.s32.totalorder %s72, %s73
      %p84 = scmp.eq.s32.totalorder %s22, 0
      %p85 = por %p83, %p84
      %p86 = scmp.ne.s32.totalorder %s72, %s73
      %p87 = scmp.eq.s32.totalorder %s23, 3
      %p88 = por %p86, %p87
      %p90 = scmp.ne.s32.totalorder %s73, %s89
      %p91 = scmp.eq.s32.totalorder %s23, 0
      %p92 = por %p90, %p91
      %s94 = sadd.s32 %s93, 1
      %p97 = scmp.eq.s32.totalorder %s17, 3
      %p98 = scmp.ne.s32.totalorder %s93, %s95
      %p99 = scmp.eq.s32.totalorder %s17, 0
      %p100 = por %p98, %p99
      %p101 = scmp.ne.s32.totalorder %s93, %s95
      %p102 = scmp.eq.s32.totalorder %s22, 3
      %p103 = por %p101, %p102
      %p104 = scmp.ne.s32.totalorder %s95, %s96
      %p105 = scmp.eq.s32.totalorder %s22, 0
      %p106 = por %p104, %p105
      %p107 = scmp.ne.s32.totalorder %s95, %s96
      %p108 = scmp.eq.s32.totalorder %s23, 3
      %p109 = por %p107, %p108
      %p111 = scmp.ne.s32.totalorder %s96, %s110
      %p112 = scmp.eq.s32.totalorder %s23, 0
      %p113 = por %p111, %p112
      %s115 = sadd.s32 %s114, 1
      %p118 = scmp.eq.s32.totalorder %s17, 3
      %p119 = scmp.ne.s32.totalorder %s114, %s116
      %p120 = scmp.eq.s32.totalorder %s17, 0
      %p121 = por %p119, %p120
      %p122 = scmp.ne.s32.totalorder %s114, %s116
      %p123 = scmp.eq.s32.totalorder %s22, 3
      %p124 = por %p122, %p123
      %p125 = scmp.ne.s32.totalorder %s116, %s117
      %p126 = scmp.eq.s32.totalorder %s22, 0
      %p127 = por %p125, %p126
      %p128 = scmp.ne.s32.totalorder %s116, %s117
      %p129 = scmp.eq.s32.totalorder %s23, 3
      %p130 = por %p128, %p129
      %p132 = scmp.ne.s32.totalorder %s117, %s131
      %p133 = scmp.eq.s32.totalorder %s23, 0
      %p134 = por %p132, %p133
      %s136 = sadd.s32 %s135, 1
      %p139 = scmp.eq.s32.totalorder %s17, 3
      %p140 = scmp.ne.s32.totalorder %s135, %s137
      %p141 = scmp.eq.s32.totalorder %s17, 0
      %p142 = por %p140, %p141
      %p143 = scmp.ne.s32.totalorder %s135, %s137
      %p144 = scmp.eq.s32.totalorder %s22, 3
      %p145 = por %p143, %p144
      %p146 = scmp.ne.s32.totalorder %s137, %s138
      %p147 = scmp.eq.s32.totalorder %s22, 0
      %p148 = por %p146, %p147
      %p149 = scmp.ne.s32.totalorder %s137, %s138
      %p150 = scmp.eq.s32.totalorder %s23, 3
      %p151 = por %p149, %p150
      %p153 = scmp.ne.s32.totalorder %s138, %s152
      %p154 = scmp.eq.s32.totalorder %s23, 0
      %p155 = por %p153, %p154
      %s157 = sadd.s32 %s156, 1
      %p160 = scmp.eq.s32.totalorder %s17, 3
      %p161 = scmp.ne.s32.totalorder %s156, %s158
      %p162 = scmp.eq.s32.totalorder %s17, 0
      %p163 = por %p161, %p162
      %p164 = scmp.ne.s32.totalorder %s156, %s158
      %p165 = scmp.eq.s32.totalorder %s22, 3
      %p166 = por %p164, %p165
      %p167 = scmp.ne.s32.totalorder %s158, %s159
      %p168 = scmp.eq.s32.totalorder %s22, 0
      %p169 = por %p167, %p168
      %p170 = scmp.ne.s32.totalorder %s158, %s159
      %p171 = scmp.eq.s32.totalorder %s23, 3
      %p172 = por %p170, %p171
      %p174 = scmp.ne.s32.totalorder %s159, %s173
      %p175 = scmp.eq.s32.totalorder %s23, 0
      %p176 = por %p174, %p175
      %s178 = sadd.s32 %s177, 1
      %p181 = scmp.eq.s32.totalorder %s17, 3
      %p182 = scmp.ne.s32.totalorder %s177, %s179
      %p183 = scmp.eq.s32.totalorder %s17, 0
      %p184 = por %p182, %p183
      %p185 = scmp.ne.s32.totalorder %s177, %s179
      %p186 = scmp.eq.s32.totalorder %s22, 3
      %p187 = por %p185, %p186
      %p188 = scmp.ne.s32.totalorder %s179, %s180
      %p189 = scmp.eq.s32.totalorder %s22, 0
      %p190 = por %p188, %p189
      %p191 = scmp.ne.s32.totalorder %s179, %s180
      %p192 = scmp.eq.s32.totalorder %s23, 3
      %p193 = por %p191, %p192
      %p195 = scmp.ne.s32.totalorder %s180, %s194
      %p196 = scmp.eq.s32.totalorder %s23, 0
      %p197 = por %p195, %p196
      %s199 = sadd.s32 %s198, 1
      %p202 = scmp.eq.s32.totalorder %s17, 3
      %p203 = scmp.ne.s32.totalorder %s198, %s200
      %p204 = scmp.eq.s32.totalorder %s17, 0
      %p205 = por %p203, %p204
      %p206 = scmp.ne.s32.totalorder %s198, %s200
      %p207 = scmp.eq.s32.totalorder %s22, 3
      %p208 = por %p206, %p207
      %p209 = scmp.ne.s32.totalorder %s200, %s201
      %p210 = scmp.eq.s32.totalorder %s22, 0
      %p211 = por %p209, %p210
      %p212 = scmp.ne.s32.totalorder %s200, %s201
      %p213 = scmp.eq.s32.totalorder %s23, 3
      %p214 = por %p212, %p213
      %p216 = scmp.ne.s32.totalorder %s201, %s215
      %p217 = scmp.eq.s32.totalorder %s23, 0
      %p218 = por %p216, %p217
      %s219 = ssub.s32 %s24, %s36
      %s220 = ssub.s32 %s25, %s32
      %s221 = sor.u32 %s219, %s220
      %p222 = scmp.eq.s32.totalorder %s221, 0
      %s224 = sadd.s32 %s223, 1
      %s225 = scalar_select %p222, %s223, %s224
      %p228 = pneg %p222
      %p229 = scmp.eq.s32.totalorder %s17, 3
      %p230 = por %p228, %p229
      %p231 = scmp.ne.s32.totalorder %s223, %s226
      %p232 = scmp.eq.s32.totalorder %s17, 0
      %p233 = por %p231, %p232
      %p234 = scmp.ne.s32.totalorder %s223, %s226
      %p235 = scmp.eq.s32.totalorder %s22, 3
      %p236 = por %p234, %p235
      %p237 = scmp.ne.s32.totalorder %s226, %s227
      %p238 = scmp.eq.s32.totalorder %s22, 0
      %p239 = por %p237, %p238
      %p240 = scmp.ne.s32.totalorder %s226, %s227
      %p241 = scmp.eq.s32.totalorder %s23, 3
      %p242 = por %p240, %p241
      %p244 = scmp.ne.s32.totalorder %s227, %s243
      %p245 = scmp.eq.s32.totalorder %s23, 0
      %p246 = por %p244, %p245
      %p247 = scmp.le.s32.totalorder 1, %s17
      %p248 = scmp.lt.s32.totalorder %s17, 5
      %p249 = pnand %p247, %p248
      %p250 = pneg %p249
      // Predicated region
      $region9: #{tpu_custom_call.1} parent=5 // pred_check
        _
      $region10: #{tpu_custom_call.1} parent=5 // pred_check_branch
        %252 = sbr.rel (%p249) target = $region12
      $region11: #{tpu_custom_call.1} parent=5 // pred_region
        %s253 = ssub.s32 %s17, 1
        // Predicated region
        $region13: #{tpu_custom_call.1} parent=11 // pred_check
          %p254 = pneg %p106
        $region14: #{tpu_custom_call.1} parent=11 // pred_check_branch
          %256 = sbr.rel (%p254) target = $region16
        $region15: #{tpu_custom_call.1} parent=11 // pred_region
          _
        $region16: #{tpu_custom_call.1} parent=11 // pred_fallthru
          _
        // Predicated region
        $region17: #{tpu_custom_call.1} parent=11 // pred_check
          %p257 = pneg %p127
        $region18: #{tpu_custom_call.1} parent=11 // pred_check_branch
          %259 = sbr.rel (%p257) target = $region20
        $region19: #{tpu_custom_call.1} parent=11 // pred_region
          _
        $region20: #{tpu_custom_call.1} parent=11 // pred_fallthru
          _
        // Predicated region
        $region21: #{tpu_custom_call.1} parent=11 // pred_check
          %p260 = pneg %p148
        $region22: #{tpu_custom_call.1} parent=11 // pred_check_branch
          %262 = sbr.rel (%p260) target = $region24
        $region23: #{tpu_custom_call.1} parent=11 // pred_region
          _
        $region24: #{tpu_custom_call.1} parent=11 // pred_fallthru
          _
        // Predicated region
        $region25: #{tpu_custom_call.1} parent=11 // pred_check
          %p263 = pneg %p169
        $region26: #{tpu_custom_call.1} parent=11 // pred_check_branch
          %265 = sbr.rel (%p263) target = $region28
        $region27: #{tpu_custom_call.1} parent=11 // pred_region
          _
        $region28: #{tpu_custom_call.1} parent=11 // pred_fallthru
          _
        // Predicated region
        $region29: #{tpu_custom_call.1} parent=11 // pred_check
          %p266 = pneg %p190
        $region30: #{tpu_custom_call.1} parent=11 // pred_check_branch
          %268 = sbr.rel (%p266) target = $region32
        $region31: #{tpu_custom_call.1} parent=11 // pred_region
          _
        $region32: #{tpu_custom_call.1} parent=11 // pred_fallthru
          _
        // Predicated region
        $region33: #{tpu_custom_call.1} parent=11 // pred_check
          %p269 = pneg %p211
        $region34: #{tpu_custom_call.1} parent=11 // pred_check_branch
          %271 = sbr.rel (%p269) target = $region36
        $region35: #{tpu_custom_call.1} parent=11 // pred_region
          _
        $region36: #{tpu_custom_call.1} parent=11 // pred_fallthru
          _
      $region12: #{tpu_custom_call.1} parent=5 // pred_fallthru
        _
      %p272 = scmp.lt.s32.totalorder %s17, 4
      // Predicated region
      $region37: #{tpu_custom_call.1} parent=5 // pred_check
        %p273 = pneg %p272
      $region38: #{tpu_custom_call.1} parent=5 // pred_check_branch
        %275 = sbr.rel (%p273) target = $region40
      $region39: #{tpu_custom_call.1} parent=5 // pred_region
        // Predicated region
        $region41: #{tpu_custom_call.1} parent=39 // pred_check
          %p276 = pneg %p51
        $region42: #{tpu_custom_call.1} parent=39 // pred_check_branch
          %278 = sbr.rel (%p276) target = $region44
        $region43: #{tpu_custom_call.1} parent=39 // pred_region
          %s279 = smul.u32 2, %s25
          %p280 = scmp.lt.s32.totalorder %s24, 1
          %s281 = scalar_select %p280, %s24, 1
          %p282 = scmp.lt.s32.totalorder %s279, 3
          %s283 = scalar_select %p282, %s279, 3
          %s284 = smul.addr %s281, 4
          %s285 = sadd.s32 %s283, %s284
          %s286 = smul.addr %s285, 8
          %s287 = scalar_lea.vmem %s0, %s286
          %s288 = smul.u32 2, %s25
        $region44: #{tpu_custom_call.1} parent=39 // pred_fallthru
          _
        // Predicated region
        $region45: #{tpu_custom_call.1} parent=39 // pred_check
          %p289 = pneg %p79
        $region46: #{tpu_custom_call.1} parent=39 // pred_check_branch
          %291 = sbr.rel (%p289) target = $region48
        $region47: #{tpu_custom_call.1} parent=39 // pred_region
          %p292 = scmp.lt.s32.totalorder %s24, 1
          %s293 = scalar_select %p292, %s24, 1
          %p294 = scmp.lt.s32.totalorder %s25, 1
          %s295 = scalar_select %p294, %s25, 1
          %s296 = smul.addr %s293, 2
          %s297 = sadd.s32 %s295, %s296
          %s298 = smul.addr %s297, 4
          %s299 = scalar_lea.vmem %s1, %s298
        $region48: #{tpu_custom_call.1} parent=39 // pred_fallthru
          _
      $region40: #{tpu_custom_call.1} parent=5 // pred_fallthru
        _
      %p300 = scmp.le.s32.totalorder 1, %s17
      %p301 = scmp.lt.s32.totalorder %s17, 5
      %p302 = pnand %p300, %p301
      %p303 = pneg %p302
      // Predicated region
      $region49: #{tpu_custom_call.1} parent=5 // pred_check
        _
      $region50: #{tpu_custom_call.1} parent=5 // pred_check_branch
        %305 = sbr.rel (%p302) target = $region52
      $region51: #{tpu_custom_call.1} parent=5 // pred_region
        %s306 = ssub.s32 %s17, 1
        %s307 = smul.u32 2, %s27
        %p308 = scmp.lt.s32.totalorder %s26, 1
        %s309 = scalar_select %p308, %s26, 1
        %p310 = scmp.lt.s32.totalorder %s307, 3
        %s311 = scalar_select %p310, %s307, 3
        %s312 = smul.addr %s309, 4
        %s313 = sadd.s32 %s311, %s312
        %s314 = smul.addr %s313, 8
        %s315 = scalar_lea.vmem %s0, %s314
        %p316 = pneg %p57
        %p317 = pneg %p54
        %p318 = scmp.lt.s32.totalorder %s26, 1
        %s319 = scalar_select %p318, %s26, 1
        %p320 = scmp.lt.s32.totalorder %s27, 1
        %s321 = scalar_select %p320, %s27, 1
        %s322 = smul.addr %s319, 2
        %s323 = sadd.s32 %s321, %s322
        %s324 = smul.addr %s323, 4
        %s325 = scalar_lea.vmem %s1, %s324
        %p326 = pneg %p85
        %p327 = pneg %p82
        %p328 = pneg %p106
        %p329 = pneg %p103
        %p330 = pneg %p127
        %p331 = pneg %p124
        %p332 = pneg %p148
        %p333 = pneg %p145
        %p334 = pneg %p169
        %p335 = pneg %p166
        %p336 = pneg %p190
        %p337 = pneg %p187
        %p338 = pneg %p211
        %p339 = pneg %p208
        %p340 = pneg %p239
        %p341 = pneg %p236
        %s342 = sand.u32 %s226, 1
        %s343 = scalar_lea.sflag [#allocation3], %s342
        %s344 = sand.u32 %s226, 1
        %s345 = smul.addr %s344, 16
        %s346 = scalar_lea.vmem [#allocation2], %s345
        %s347 = smul.u32 2, %s27
        %p348 = scmp.lt.s32.totalorder %s26, 1
        %s349 = scalar_select %p348, %s26, 1
        %p350 = scmp.lt.s32.totalorder %s347, 3
        %s351 = scalar_select %p350, %s347, 3
        %s352 = smul.addr %s349, 4
        %s353 = sadd.s32 %s351, %s352
        %s354 = smul.addr %s353, 8
        %s355 = scalar_lea.vmem %s0, %s354
        %s356 = smul.u32 2, %s27
        %p357 = scmp.lt.s32.totalorder %s26, 1
        %s358 = scalar_select %p357, %s26, 1
        %p359 = scmp.lt.s32.totalorder %s27, 1
        %s360 = scalar_select %p359, %s27, 1
        %s361 = smul.addr %s358, 2
        %s362 = sadd.s32 %s360, %s361
        %s363 = smul.addr %s362, 4
        %s364 = scalar_lea.vmem %s1, %s363
        %s365 = smul.u32 2, %s27
        %v366 = vld [vmem:[%s355] sm:$0xff]
        %v367 = vld [vmem:[%s355 + $0x8] sm:$0xff]
        %v368 = vld [vmem:[%s364] sm:$0xf]
        %vm371 = vcmask 1041408
        %v372 = vrot.slane %v366, 6
        %v373 = vrot.slane %v367, 6
        %v374 = vsel %vm371, %v372, %v373
        %v378 = vsel %vm371, %v368, %v372
        %v379 = vsel %vm371, %v373, %v368
        %vm382 = vcmask 1046528
        %v383 = vrot.slane %v378, 1
        %v384 = vrot.slane %v374, 1
        %v385 = vsel %vm382, %v383, %v384
        %v386 = vrot.slane %v379, 1
        %v387 = vsel %vm382, %v384, %v386
        %388 = vrot.lane.b32.xlu0 %v385, 32
        %v389 = vpop.permute.xlu0 %388
        %390 = vrot.lane.b32.xlu0 %v387, 32
        %v391 = vpop.permute.xlu0 %390
        %392 = vrot.lane.b32.xlu0 %v386, 32
        %v393 = vpop.permute.xlu0 %392
        %vm397 = vcmask 1045504
        %v398 = vrot.slane %v378, 2
        %v399 = vrot.slane %v374, 2
        %v400 = vsel %vm397, %v398, %v399
        %v401 = vrot.slane %v379, 2
        %v402 = vsel %vm397, %v399, %v401
        %403 = vrot.lane.b32.xlu0 %v400, 64
        %v404 = vpop.permute.xlu0 %403
        %405 = vrot.lane.b32.xlu0 %v402, 64
        %v406 = vpop.permute.xlu0 %405
        %407 = vrot.lane.b32.xlu0 %v401, 64
        %v408 = vpop.permute.xlu0 %407
        %vm412 = vcmask 261120
        %v413 = vsel %vm412, %v378, %v389
        %v414 = vsel %vm412, %v374, %v391
        %v415 = vsel %vm412, %v379, %v393
        %vm416 = vcmask 523264
        %v417 = vsel %vm416, %v413, %v404
        %v418 = vsel %vm416, %v414, %v406
        %v419 = vsel %vm416, %v415, %v408
        %v420 = vld [vmem:[%s2] sm:$0xff]
        %v421 = vld [vmem:[%s2 + $0x8] sm:$0xff]
        %v422 = vld [vmem:[%s2 + $0x10] sm:$0xff]
        %v423 = vld [vmem:[%s2 + $0x18] sm:$0xff]
        %v424 = vld [vmem:[%s2 + $0x20] sm:$0xff]
        %v425 = vld [vmem:[%s2 + $0x28] sm:$0xff]
        %v426 = vld [vmem:[%s2 + $0x30] sm:$0xff]
        %v427 = vld [vmem:[%s2 + $0x38] sm:$0xff]
        %v428 = vld [vmem:[%s2 + $0x40] sm:$0xff]
        %v429 = vld [vmem:[%s2 + $0x48] sm:$0xff]
        %v430 = vld [vmem:[%s2 + $0x50] sm:$0xff]
        %v431 = vld [vmem:[%s2 + $0x58] sm:$0xff]
        %v432 = vld [vmem:[%s3] sm:$0x7]
        %v433 = vperm.slane %v432, 0
        %vm434 = vcmask 785408
        %v436 = vsel %vm434, %v417, 0
        %v439 = vsel %vm434, %v418, 0
        %v442 = vsel %vm434, %v419, 0
        %444 = vmatpush.msra.mxu0 0.0
        %445 = vmatpush.msra.mxu0 0.0
        %446 = vmatpush.msra.mxu0 0.0
        %447 = vmatpush.msra.mxu0 0.0
        %448 = vmatpush.msra.mxu0 %v431
        %449 = vmatpush.msra.mxu0 %v430
        %450 = vmatpush.msra.mxu0 %v429
        %451 = vmatpush.msra.mxu0 %v428
        %452 = vmatpush.msra.mxu0 %v427
        %453 = vmatpush.msra.mxu0 %v426
        %454 = vmatpush.msra.mxu0 %v425
        %455 = vmatpush.msra.mxu0 %v424
        %456 = vmatpush.msra.mxu0 %v423
        %457 = vmatpush.msra.mxu0 %v422
        %458 = vmatpush.msra.mxu0 %v421
        %459 = vmatpush.msra.mxu0 %v420
        %460 = vmatmul.f32.gmra.mxu0 %v436
        %v461 = vpop.f32.mrf.mxu0
        %v462 = vadd.f32 %v433, %v461
        %463 = vmatmul.f32.gmra.mxu0 %v439
        %v464 = vpop.f32.mrf.mxu0
        %v465 = vadd.f32 %v433, %v464
        %466 = vmatmul.f32.gmra.mxu0 %v442
        %v467 = vpop.f32.mrf.mxu0
        %v468 = vadd.f32 %v433, %v467
        %469 = vdwg.mxu0
        %v470 = vmax.f32 %v462, 0.0
        %v471 = vmax.f32 %v465, 0.0
        %v472 = vmax.f32 %v468, 0.0
        %v473 = vsel %vm412, %v470, 0.0
        %474 = vadd.xlane.f32.xlu0 %v473
        %v475 = vpop.xlane.xlu0 %474
        %v476 = vsel %vm412, %v471, 0.0
        %477 = vadd.xlane.f32.xlu0 %v476
        %v478 = vpop.xlane.xlu0 %477
        %vm479 = vcmask 254976
        %v480 = vsel %vm479, %v472, 0.0
        %481 = vadd.xlane.f32.xlu0 %v480
        %v482 = vpop.xlane.xlu0 %481
        %v483 = vrcp.pop 32.0
        %v484 = vmul.f32 32.0, %v483
        %v485 = vsub.f32 1.0, %v484
        %v486 = vmul.f32 %v483, %v485
        %v487 = vadd.f32 %v483, %v486
        %vm488 = vweird.f32 %v483
        %v489 = vsel %vm488, %v483, %v487
        %v490 = vmul.f32 %v475, %v489
        %v491 = vmul.f32 %v478, %v489
        %v492 = vmul.f32 %v482, %v489
        %v493 = vsub.f32 %v470, %v490
        %v494 = vsub.f32 %v471, %v491
        %v495 = vsub.f32 %v472, %v492
        %v496 = vmul.f32 %v493, %v493
        %v497 = vmul.f32 %v494, %v494
        %v498 = vmul.f32 %v495, %v495
        %v499 = vsel %vm412, %v496, 0.0
        %500 = vadd.xlane.f32.xlu0 %v499
        %v501 = vpop.xlane.xlu0 %500
        %v502 = vsel %vm412, %v497, 0.0
        %503 = vadd.xlane.f32.xlu0 %v502
        %v504 = vpop.xlane.xlu0 %503
        %v505 = vsel %vm479, %v498, 0.0
        %506 = vadd.xlane.f32.xlu0 %v505
        %v507 = vpop.xlane.xlu0 %506
        %v508 = vmul.f32 %v501, %v489
        %v509 = vmul.f32 %v504, %v489
        %v510 = vmul.f32 %v507, %v489
        %v511 = vadd.f32 %v508, 1e-05
        %v512 = vadd.f32 %v509, 1e-05
        %v513 = vadd.f32 %v510, 1e-05
        %v514 = vrsqrt.pop %v511
        %v515 = vmul.f32 %v514, %v511
        %v516 = vmul.f32 %v515, %v514
        %v517 = vmul.f32 0.5, %v516
        %v518 = vsub.f32 1.5, %v517
        %v519 = vmul.f32 %v514, %v518
        %vm520 = vweird.f32 %v511
        %vm521 = vweird.f32 %v514
        %vm522 = vmor %vm520, %vm521
        %v523 = vsel %vm522, %v514, %v519
        %v524 = vrsqrt.pop %v512
        %v525 = vmul.f32 %v524, %v512
        %v526 = vmul.f32 %v525, %v524
        %v527 = vmul.f32 0.5, %v526
        %v528 = vsub.f32 1.5, %v527
        %v529 = vmul.f32 %v524, %v528
        %vm530 = vweird.f32 %v512
        %vm531 = vweird.f32 %v524
        %vm532 = vmor %vm530, %vm531
        %v533 = vsel %vm532, %v524, %v529
        %v534 = vrsqrt.pop %v513
        %v535 = vmul.f32 %v534, %v513
        %v536 = vmul.f32 %v535, %v534
        %v537 = vmul.f32 0.5, %v536
        %v538 = vsub.f32 1.5, %v537
        %v539 = vmul.f32 %v534, %v538
        %vm540 = vweird.f32 %v513
        %vm541 = vweird.f32 %v534
        %vm542 = vmor %vm540, %vm541
        %v543 = vsel %vm542, %v534, %v539
        %v544 = vmul.f32 %v493, %v523
        %v545 = vmul.f32 %v494, %v533
        %v546 = vmul.f32 %v495, %v543
        %v547 = vperm.slane %v432, 1
        %v548 = vmul.f32 %v544, %v547
        %v549 = vmul.f32 %v545, %v547
        %v550 = vmul.f32 %v546, %v547
        %v551 = vperm.slane %v432, 2
        %v552 = vadd.f32 %v548, %v551
        %v553 = vadd.f32 %v549, %v551
        %v554 = vadd.f32 %v550, %v551
        %s555 = smul.u32 %s27, 16
        %s556 = ssub.s32 %s555, 1
        %v557 = vlaneseq
        %v558 = vshrl.u32 %v557, 7
        %v559 = vadd.s32 %v558, 8
        %v560 = vadd.s32 %v558, 16
        %v561 = vstv %s556
        %v562 = vadd.s32 %v561, %v558
        %v563 = vadd.s32 %v561, %v559
        %v564 = vadd.s32 %v561, %v560
        %vm565 = vcmp.ge.s32.totalorder %v562, 0
        %vm566 = vcmp.ge.s32.totalorder %v563, 0
        %vm567 = vcmp.ge.s32.totalorder %v564, 0
        %vm568 = vcmp.lt.s32.totalorder %v562, 32
        %vm569 = vcmp.lt.s32.totalorder %v563, 32
        %vm570 = vcmp.lt.s32.totalorder %v564, 32
        %vm571 = vmand %vm565, %vm568
        %vm572 = vmand %vm566, %vm569
        %vm573 = vmand %vm567, %vm570
        %v574 = vsel %vm571, 1, 0
        %v575 = vsel %vm572, 1, 0
        %v576 = vsel %vm573, 1, 0
        %vm577 = vcmp.eq.s32.totalorder %v574, 1
        %vm578 = vcmp.eq.s32.totalorder %v575, 1
        %vm579 = vcmp.eq.s32.totalorder %v576, 1
        %v580 = vsel %vm577, %v552, 0.0
        %v581 = vsel %vm578, %v553, 0.0
        %v582 = vsel %vm579, %v554, 0.0
        %v586 = vrot.slane %v580, 1
        %v587 = vrot.slane %v581, 1
        %v588 = vsel %vm382, %v586, %v587
        %v589 = vrot.slane %v582, 1
        %v590 = vsel %vm382, %v587, %v589
        %591 = vrot.lane.b32.xlu0 %v588, 32
        %v592 = vpop.permute.xlu0 %591
        %593 = vrot.lane.b32.xlu0 %v590, 32
        %v594 = vpop.permute.xlu0 %593
        %v597 = vrot.slane %v580, 2
        %v598 = vrot.slane %v581, 2
        %v599 = vsel %vm397, %v597, %v598
        %v600 = vrot.slane %v582, 2
        %v601 = vsel %vm397, %v598, %v600
        %602 = vrot.lane.b32.xlu0 %v599, 64
        %v603 = vpop.permute.xlu0 %602
        %604 = vrot.lane.b32.xlu0 %v601, 64
        %v605 = vpop.permute.xlu0 %604
        %v608 = vsel %vm412, %v580, %v592
        %v609 = vsel %vm412, %v581, %v594
        %v610 = vsel %vm416, %v608, %v603
        %v611 = vsel %vm416, %v609, %v605
        %v612 = vld [vmem:[%s4] sm:$0xff]
        %v613 = vld [vmem:[%s4 + $0x8] sm:$0xff]
        %v614 = vld [vmem:[%s4 + $0x10] sm:$0xff]
        %v615 = vld [vmem:[%s4 + $0x18] sm:$0xff]
        %v616 = vld [vmem:[%s4 + $0x20] sm:$0xff]
        %v617 = vld [vmem:[%s4 + $0x28] sm:$0xff]
        %v618 = vld [vmem:[%s4 + $0x30] sm:$0xff]
        %v619 = vld [vmem:[%s4 + $0x38] sm:$0xff]
        %v620 = vld [vmem:[%s4 + $0x40] sm:$0xff]
        %v621 = vld [vmem:[%s4 + $0x48] sm:$0xff]
        %v622 = vld [vmem:[%s4 + $0x50] sm:$0xff]
        %v623 = vld [vmem:[%s4 + $0x58] sm:$0xff]
        %v624 = vld [vmem:[%s5] sm:$0x7]
        %v625 = vperm.slane %v624, 0
        %v627 = vsel %vm434, %v610, 0
        %v630 = vsel %vm434, %v611, 0
        %632 = vmatpush.msra.mxu0 0.0
        %633 = vmatpush.msra.mxu0 0.0
        %634 = vmatpush.msra.mxu0 0.0
        %635 = vmatpush.msra.mxu0 0.0
        %636 = vmatpush.msra.mxu0 %v623
        %637 = vmatpush.msra.mxu0 %v622
        %638 = vmatpush.msra.mxu0 %v621
        %639 = vmatpush.msra.mxu0 %v620
        %640 = vmatpush.msra.mxu0 %v619
        %641 = vmatpush.msra.mxu0 %v618
        %642 = vmatpush.msra.mxu0 %v617
        %643 = vmatpush.msra.mxu0 %v616
        %644 = vmatpush.msra.mxu0 %v615
        %645 = vmatpush.msra.mxu0 %v614
        %646 = vmatpush.msra.mxu0 %v613
        %647 = vmatpush.msra.mxu0 %v612
        %648 = vmatmul.f32.gmra.mxu0 %v627
        %v649 = vpop.f32.mrf.mxu0
        %v650 = vadd.f32 %v625, %v649
        %651 = vmatmul.f32.gmra.mxu0 %v630
        %v652 = vpop.f32.mrf.mxu0
        %v653 = vadd.f32 %v625, %v652
        %654 = vdwg.mxu0
        %v655 = vmax.f32 %v650, 0.0
        %v656 = vmax.f32 %v653, 0.0
        %v657 = vsel %vm412, %v655, 0.0
        %658 = vadd.xlane.f32.xlu0 %v657
        %v659 = vpop.xlane.xlu0 %658
        %v660 = vsel %vm412, %v656, 0.0
        %661 = vadd.xlane.f32.xlu0 %v660
        %v662 = vpop.xlane.xlu0 %661
        %v663 = vmul.f32 %v659, %v489
        %v664 = vmul.f32 %v662, %v489
        %v665 = vsub.f32 %v655, %v663
        %v666 = vsub.f32 %v656, %v664
        %v667 = vmul.f32 %v665, %v665
        %v668 = vmul.f32 %v666, %v666
        %v669 = vsel %vm412, %v667, 0.0
        %670 = vadd.xlane.f32.xlu0 %v669
        %v671 = vpop.xlane.xlu0 %670
        %v672 = vsel %vm412, %v668, 0.0
        %673 = vadd.xlane.f32.xlu0 %v672
        %v674 = vpop.xlane.xlu0 %673
        %v675 = vmul.f32 %v671, %v489
        %v676 = vmul.f32 %v674, %v489
        %v677 = vadd.f32 %v675, 1e-05
        %v678 = vadd.f32 %v676, 1e-05
        %v679 = vrsqrt.pop %v677
        %v680 = vmul.f32 %v679, %v677
        %v681 = vmul.f32 %v680, %v679
        %v682 = vmul.f32 0.5, %v681
        %v683 = vsub.f32 1.5, %v682
        %v684 = vmul.f32 %v679, %v683
        %vm685 = vweird.f32 %v677
        %vm686 = vweird.f32 %v679
        %vm687 = vmor %vm685, %vm686
        %v688 = vsel %vm687, %v679, %v684
        %v689 = vrsqrt.pop %v678
        %v690 = vmul.f32 %v689, %v678
        %v691 = vmul.f32 %v690, %v689
        %v692 = vmul.f32 0.5, %v691
        %v693 = vsub.f32 1.5, %v692
        %v694 = vmul.f32 %v689, %v693
        %vm695 = vweird.f32 %v678
        %vm696 = vweird.f32 %v689
        %vm697 = vmor %vm695, %vm696
        %v698 = vsel %vm697, %v689, %v694
        %v699 = vmul.f32 %v665, %v688
        %v700 = vmul.f32 %v666, %v698
        %v701 = vperm.slane %v624, 1
        %v702 = vmul.f32 %v699, %v701
        %v703 = vmul.f32 %v700, %v701
        %v704 = vperm.slane %v624, 2
        %v705 = vadd.f32 %v702, %v704
        %v706 = vadd.f32 %v703, %v704
        %v707 = vld [vmem:[%s6] sm:$0xff]
        %v708 = vld [vmem:[%s6 + $0x8] sm:$0xff]
        %v709 = vld [vmem:[%s6 + $0x10] sm:$0xff]
        %v710 = vld [vmem:[%s6 + $0x18] sm:$0xff]
        %v711 = vld [vmem:[%s7] sm:$0x1]
        %v713 = vperm.slane %v711, 0
        %v716 = vsel %vm412, %v705, 0
        %v719 = vsel %vm412, %v706, 0
        %721 = vmatpush.msra.mxu0 0.0
        %722 = vmatpush.msra.mxu0 0.0
        %723 = vmatpush.msra.mxu0 0.0
        %724 = vmatpush.msra.mxu0 0.0
        %725 = vmatpush.msra.mxu0 0.0
        %726 = vmatpush.msra.mxu0 0.0
        %727 = vmatpush.msra.mxu0 0.0
        %728 = vmatpush.msra.mxu0 0.0
        %729 = vmatpush.msra.mxu0 0.0
        %730 = vmatpush.msra.mxu0 0.0
        %731 = vmatpush.msra.mxu0 0.0
        %732 = vmatpush.msra.mxu0 0.0
        %733 = vmatpush.msra.mxu0 %v710
        %734 = vmatpush.msra.mxu0 %v709
        %735 = vmatpush.msra.mxu0 %v708
        %736 = vmatpush.msra.mxu0 %v707
        %737 = vmatmul.f32.gmra.mxu0 %v716
        %v738 = vpop.f32.mrf.mxu0
        %v739 = vadd.f32 %v713, %v738
        %740 = vmatmul.f32.gmra.mxu0 %v719
        %v741 = vpop.f32.mrf.mxu0
        %v742 = vadd.f32 %v713, %v741
        %743 = vdwg.mxu0
        %744 = vst [vmem:[%s346] sm:$0xff] %v739
        %745 = vst [vmem:[%s346 + $0x8] sm:$0xff] %v742
        %s746 = sand.u32 %s226, 1
        %s747 = scalar_lea.sflag [#allocation3], %s746
        %s748 = sand.u32 %s226, 1
        %s749 = smul.addr %s748, 16
        %s750 = scalar_lea.vmem [#allocation2], %s749
        // Predicated region
        $region53: #{tpu_custom_call.1} parent=51 // pred_check
          %p751 = pneg %p236
        $region54: #{tpu_custom_call.1} parent=51 // pred_check_branch
          %753 = sbr.rel (%p751) target = $region56
        $region55: #{tpu_custom_call.1} parent=51 // pred_region
          %s754 = smul.u32 2, %s27
          %756 = vsyncadd %s747, 0
          %s757 = smul.addr %s26, 4
          %s758 = sadd.s32 %s754, %s757
          %s759 = smul.addr %s758, 8
          %s760 = scalar_lea.hbm %s8, %s759
          %s761 = sshll.u32 %s750, 4
          %s762 = int_to_ptr.vmem [resolvable:$true] %s761
          %s763 = sshll.u32 %s760, 4
          %s764 = int_to_ptr.hbm [resolvable:$true] %s763
          %769 = dma.vmem_to_hbm [thread:$0]  %s762, 256, %s764, %s747, 128, 128, 8
        $region56: #{tpu_custom_call.1} parent=51 // pred_fallthru
          _
      $region52: #{tpu_custom_call.1} parent=5 // pred_fallthru
        _
      %p770 = scmp.le.s32.totalorder 2, %s17
      // Predicated region
      $region57: #{tpu_custom_call.1} parent=5 // pred_check
        %p771 = pneg %p770
      $region58: #{tpu_custom_call.1} parent=5 // pred_check_branch
        %773 = sbr.rel (%p771) target = $region60
      $region59: #{tpu_custom_call.1} parent=5 // pred_region
        %s774 = ssub.s32 %s17, 2
        // Predicated region
        $region61: #{tpu_custom_call.1} parent=59 // pred_check
          %p775 = pneg %p242
        $region62: #{tpu_custom_call.1} parent=59 // pred_check_branch
          %777 = sbr.rel (%p775) target = $region64
        $region63: #{tpu_custom_call.1} parent=59 // pred_region
          %s778 = sand.u32 %s227, 1
          %s779 = scalar_lea.sflag [#allocation3], %s778
          %s780 = sand.u32 %s227, 1
          %s781 = smul.addr %s780, 16
          %s782 = scalar_lea.vmem [#allocation2], %s781
          %784 = dma.done %s779, 256
        $region64: #{tpu_custom_call.1} parent=59 // pred_fallthru
          _
      $region60: #{tpu_custom_call.1} parent=5 // pred_fallthru
        _
    $region6: #{tpu_custom_call.1} parent=1 // loop_footer
      %s21 = sadd.s32 1, %s17
    $region7: #{tpu_custom_call.1} parent=1 // loop_footer_branch
      %16 = sbr.rel target = $region3
    $region8: #{tpu_custom_call.1} parent=1 // loop_exit
      _
    %785 = vsyncpa [#allocation3], 1
    %s786 = scalar_lea.sflag [#allocation3], 1
    %787 = vsyncpa %s786, 1

</llo_original>
